<compile_context>
chip_gen: v7x
topology: tpu7x:2x2x1
jax: 0.10.0
libtpu: 0.0.40
codegen_flags: <defaults>
</compile_context>

<pallas_src>
import functools

import jax
import jax.numpy as jnp
from jax.experimental import pallas as pl
from jax.experimental.pallas import tpu as pltpu

HIDDEN = 16  # fixed by the module: nn.GRU(hidden_size=16, bidirectional=True) -> 32 features


def gru_kernel(x_ref,     # [(T+1)*BB, KP] f32  time-major activations (+1 col, zero-pad); last BB rows = last-valid-step x
               len_ref,   # [BB, 1]        f32  sequence lengths for this batch block
               w_ref,     # [KP+3H, Cp]    bf16 weight slab: rows [0,KP)=w_in(+bias row), [KP,KP+H)=w_hh_f, [KP+H,KP+3H)=w_out
               aux_ref,   # [8, Cp]        f32  row 0 = b_out, row 1 = [b_hh_n_fwd | b_hh_n_bwd | 0]
               o_ref,     # [BB, Cp]       f32
               *, T, BB):
    H = HIDDEN
    H2, H3, H6 = 2 * H, 3 * H, 6 * H
    KP = x_ref.shape[1]

    # ---- static slices of the packed weight slab (one-time, 16-row-aligned) ----------
    w_in = w_ref[0:KP, 0:H6]                 # [KP, 6H] bf16  ([w_ih_f|w_ih_b] + folded-bias row)
    whh_f = w_ref[KP:KP + H, 0:H3]           # [H, 3H]  bf16
    w_out = w_ref[KP + H:KP + H3, :]         # [2H, Cp] bf16

    b_out_row = aux_ref[0:1, :]                                   # [1, Cp] f32
    bhh_nf = jnp.broadcast_to(aux_ref[1:2, 0:H], (BB, H))         # fwd n-gate recurrent bias
    bhh_nb = jnp.broadcast_to(aux_ref[1:2, H:H2], (BB, H))        # bwd n-gate recurrent bias
    len_col = len_ref[...]                                        # [BB, 1] f32

    # ---- one fused bf16 MXU matmul for ALL input projections (both directions) -------
    # Biases are pre-folded: x carries a constant-1 column, w_in carries the bias row.
    xb = x_ref[...].astype(jnp.bfloat16)
    proj = jnp.dot(xb, w_in, preferred_element_type=jnp.float32)  # [(T+1)*BB, 6H] f32
    gi_fwd = proj[:T * BB, :H3]              # forward-direction projections, all T steps
    gi_bwd = proj[T * BB:, H3:H6]            # backward projection of the last-valid rows

    # Per-step freeze masks (off the serial chain; exact for values in {0,1}).
    masks = [(len_col > float(t)).astype(jnp.float32) for t in range(T)]   # each [BB, 1]

    # ---- forward recurrence: fully unrolled; only the tiny bf16 recurrent matmul plus
    # ---- gate math sits on the serial critical path ----------------------------------
    h = jnp.zeros((BB, H), jnp.float32)
    for t in range(T):                       # T is a compile-time constant
        gi = gi_fwd[t * BB:(t + 1) * BB, :]                       # static 8-row-aligned slice
        gh = jnp.dot(h.astype(jnp.bfloat16), whh_f,
                     preferred_element_type=jnp.float32)          # [BB, 3H]
        rz = jax.nn.sigmoid(gi[:, :H2] + gh[:, :H2])              # fused r/z activation
        r = rz[:, :H]
        z = rz[:, H:]
        n = jnp.tanh(gi[:, H2:] + r * (gh[:, H2:] + bhh_nf))
        # h_new = (1-z)*n + z*h  ==  h + (1-z)*(n-h); mask folds in for free.
        h = h + masks[t] * ((1.0 - z) * (n - h))

    # ---- backward direction at the last valid timestep: one step from h = 0 ----------
    # With h=0 the recurrent term is b_hh_b; its r/z parts are already in the bias row.
    rz_b = jax.nn.sigmoid(gi_bwd[:, :H2])
    r_b = rz_b[:, :H]
    z_b = rz_b[:, H:]
    n_b = jnp.tanh(gi_bwd[:, H2:] + r_b * bhh_nb)
    h_b = (1.0 - z_b) * n_b

    # ---- classifier: lane-dense [BB, Cp] store (single unmasked vreg at BB=8, Cp=128) -
    feat = jnp.concatenate([h, h_b], axis=-1).astype(jnp.bfloat16)          # [BB, 2H]
    o_ref[...] = jnp.dot(feat, w_out, preferred_element_type=jnp.float32) + b_out_row


def test_gru_forward(seqs, lengths, params, *, bb=8):
    """seqs: [B, T, 1] int32 token ids, lengths: [B] int32 (>=1, sorted descending as
    pack_padded_sequence requires). Returns [B, num_categories] float32."""
    H = HIDDEN
    B, T = seqs.shape[0], seqs.shape[1]
    E = params["embedding"].shape[1]
    C = params["w_out"].shape[1]

    KP = ((E + 1 + 15) // 16) * 16        # input width padded (features + ones column)
    Cp = max(128, ((C + 127) // 128) * 128)
    Bp = ((B + bb - 1) // bb) * bb        # pad batch to the block width (multiple of 8)
    nb = Bp // bb

    lengths = lengths.astype(jnp.int32)

    # Embedding lookup + last-valid-step row gather are data-dependent gathers -> JAX glue.
    # TODO(synk): at real batch sizes, move the embedding gather in-kernel via
    # PrefetchScalarGridSpec scalar-prefetched token ids + DMA row gather to avoid
    # materializing [B, T, E] activations in HBM.
    x = jnp.take(params["embedding"], seqs[:, :, 0], axis=0).astype(jnp.float32)  # [B, T, E]
    x_last = x[jnp.arange(B), lengths - 1]                                        # [B, E]

    pad_b = Bp - B
    x_p = jnp.pad(x, ((0, pad_b), (0, 0), (0, 0)))
    x_last_p = jnp.pad(x_last, ((0, pad_b), (0, 0)))
    len_p = jnp.pad(lengths, (0, pad_b), constant_values=1)       # dummy length for pad rows

    # Time-major activations with the last-valid-step rows appended as pseudo-step T,
    # then reordered to batch-block-major so each grid step reads one contiguous slab.
    x_tm = jnp.transpose(x_p, (1, 0, 2))                          # [T, Bp, E]
    x_aug = jnp.concatenate([x_tm, x_last_p[None]], axis=0)       # [T+1, Bp, E]
    x_blk = jnp.transpose(x_aug.reshape(T + 1, nb, bb, E), (1, 0, 2, 3))   # [nb, T+1, bb, E]
    ones = jnp.ones(x_blk.shape[:-1] + (1,), jnp.float32)
    x_blk = jnp.concatenate([x_blk, ones], axis=-1)               # constant-1 bias column
    x_blk = jnp.pad(x_blk, ((0, 0), (0, 0), (0, 0), (0, KP - (E + 1))))
    x_flat = x_blk.reshape(nb * (T + 1) * bb, KP)                 # [(nb*(T+1)*bb), KP] f32

    len_col = len_p.astype(jnp.float32).reshape(Bp, 1)            # [Bp, 1]

    # ---- packed bf16 weight slab: fused input weights (+bias row) | w_hh_f | w_out ----
    def fold(b_ih, b_hh):   # fold recurrent r/z biases into the input-side bias
        return b_ih + jnp.concatenate(
            [b_hh[:, :2 * H], jnp.zeros_like(b_hh[:, 2 * H:])], axis=1)

    w_in = jnp.concatenate([params["w_ih_f"], params["w_ih_b"]], axis=1)        # [E, 6H]
    b_gi = jnp.concatenate([fold(params["b_ih_f"], params["b_hh_f"]),
                            fold(params["b_ih_b"], params["b_hh_b"])], axis=1)  # [1, 6H]
    w_in_aug = jnp.concatenate([w_in, b_gi], axis=0)                            # [E+1, 6H]
    w_in_aug = jnp.pad(w_in_aug, ((0, KP - (E + 1)), (0, Cp - 6 * H)))          # [KP, Cp]
    whh_pad = jnp.pad(params["w_hh_f"], ((0, 0), (0, Cp - 3 * H)))              # [H, Cp]
    wout_pad = jnp.pad(params["w_out"], ((0, 0), (0, Cp - C)))                  # [2H, Cp]
    w_slab = jnp.concatenate([w_in_aug, whh_pad, wout_pad],
                             axis=0).astype(jnp.bfloat16)                       # [KP+3H, Cp]

    # ---- packed f32 bias slab: row 0 = b_out, row 1 = [b_hh_n_fwd | b_hh_n_bwd] -------
    b_out_pad = jnp.pad(params["b_out"], ((0, 0), (0, Cp - C)))                 # [1, Cp]
    bhh_n = jnp.concatenate([params["b_hh_f"][:, 2 * H:],
                             params["b_hh_b"][:, 2 * H:]], axis=1)              # [1, 2H]
    bhh_n = jnp.pad(bhh_n, ((0, 0), (0, Cp - 2 * H)))
    aux = jnp.concatenate([b_out_pad, bhh_n, jnp.zeros((6, Cp), jnp.float32)], axis=0)  # [8, Cp]

    kernel = functools.partial(gru_kernel, T=T, BB=bb)
    out_p = pl.pallas_call(
        kernel,
        out_shape=jax.ShapeDtypeStruct((Bp, Cp), jnp.float32),
        grid=(nb,),
        in_specs=[
            pl.BlockSpec(((T + 1) * bb, KP), lambda i: (i, 0)),   # activations: per block
            pl.BlockSpec((bb, 1), lambda i: (i, 0)),              # lengths:     per block
            pl.BlockSpec((KP + 3 * H, Cp), lambda i: (0, 0)),     # weight slab: resident
            pl.BlockSpec((8, Cp), lambda i: (0, 0)),              # bias slab:   resident
        ],
        out_specs=pl.BlockSpec((bb, Cp), lambda i: (i, 0)),
        compiler_params=pltpu.CompilerParams(
            dimension_semantics=("parallel",)),
    )(x_flat, len_col, w_slab, aux)
    return out_p[:B, :C]


def init_params(key, vocab, emb_dim, num_categories):
    """Deterministic synthetic parameters (module __init__ only defines shapes)."""
    H = HIDDEN
    ks = jax.random.split(key, 11)

    def u(k, shape, scale=0.25):
        return jax.random.uniform(k, shape, jnp.float32, -1.0, 1.0) * scale

    return dict(
        embedding=u(ks[0], (vocab, emb_dim), 1.0),
        # PyTorch stores GRU weights as [3H, in]; kept transposed [in, 3H] here.
        w_ih_f=u(ks[1], (emb_dim, 3 * H)),
        w_hh_f=u(ks[2], (H, 3 * H)),
        b_ih_f=u(ks[3], (1, 3 * H)),
        b_hh_f=u(ks[4], (1, 3 * H)),
        w_ih_b=u(ks[5], (emb_dim, 3 * H)),
        w_hh_b=u(ks[6], (H, 3 * H)),
        b_ih_b=u(ks[7], (1, 3 * H)),
        b_hh_b=u(ks[8], (1, 3 * H)),
        w_out=u(ks[9], (2 * H, num_categories)),
        b_out=u(ks[10], (1, num_categories)),
    )


def reference_forward(seqs, lengths, params):
    """Pure-JAX f32 reference mirroring the PyTorch packed bidirectional GRU semantics."""
    H = HIDDEN
    x = jnp.take(params["embedding"], seqs[:, :, 0], axis=0).astype(jnp.float32)
    B, T, _ = x.shape

    def step(h, xt, wih, whh, bih, bhh):
        gi = xt @ wih + bih
        gh = h @ whh + bhh
        r = jax.nn.sigmoid(gi[:, :H] + gh[:, :H])
        z = jax.nn.sigmoid(gi[:, H:2 * H] + gh[:, H:2 * H])
        n = jnp.tanh(gi[:, 2 * H:] + r * gh[:, 2 * H:])
        return (1.0 - z) * n + z * h

    h = jnp.zeros((B, H), jnp.float32)
    for t in range(T):
        hn = step(h, x[:, t], params["w_ih_f"], params["w_hh_f"],
                  params["b_ih_f"], params["b_hh_f"])
        h = jnp.where((t < lengths).reshape(B, 1), hn, h)
    x_last = x[jnp.arange(B), lengths - 1]
    hb = step(jnp.zeros((B, H), jnp.float32), x_last, params["w_ih_b"],
              params["w_hh_b"], params["b_ih_b"], params["b_hh_b"])
    feat = jnp.concatenate([h, hb], axis=-1)
    return feat @ params["w_out"] + params["b_out"]


if __name__ == "__main__":
    key = jax.random.PRNGKey(0)
    kp, kseq = jax.random.split(key)

    VOCAB, EMB_DIM, NUM_CATEGORIES = 20, 8, 5
    BATCH, SEQ = 2, 8

    params = init_params(kp, VOCAB, EMB_DIM, NUM_CATEGORIES)
    seqs = jax.random.randint(kseq, (BATCH, SEQ, 1), 0, VOCAB, dtype=jnp.int32)
    lengths = jnp.array([8, 5], dtype=jnp.int32)  # sorted descending (pack_padded_sequence)

    out = test_gru_forward(seqs, lengths, params)
    jax.block_until_ready(out)

    ref = reference_forward(seqs, lengths, params)
    assert out.shape == (BATCH, NUM_CATEGORIES)
    # Tolerance accounts for bf16 MXU operands (f32 accumulation) vs. the f32 reference.
    assert bool(jnp.allclose(out, ref, atol=2e-2, rtol=2e-2)), (out, ref)

    print("KERNEL_OK")
</pallas_src>

<mosaic_0001>
module attributes {stable_mosaic.version = 11 : i64} {
  func.func @gru_kernel(%arg0: i32, %arg1: memref<72x16xf32, #tpu.memory_space<vmem>>, %arg2: memref<8x1xf32, #tpu.memory_space<vmem>>, %arg3: memref<64x128xbf16, #tpu.memory_space<vmem>>, %arg4: memref<8x128xf32, #tpu.memory_space<vmem>>, %arg5: memref<8x128xf32, #tpu.memory_space<vmem>>) attributes {dimension_semantics = [#tpu.dimension_semantics<parallel>], iteration_bounds = array<i64: 1>, scalar_prefetch = 0 : i64, scratch_operands = 0 : i64, tpu.core_type = #tpu.core_type<tc>, window_params = [{transform_indices = @transform_0, window_bounds = array<i64: 72, 16>}, {transform_indices = @transform_1, window_bounds = array<i64: 8, 1>}, {pipeline_mode = #tpu.pipeline_mode<synchronous>, transform_indices = @transform_2, window_bounds = array<i64: 64, 128>}, {pipeline_mode = #tpu.pipeline_mode<synchronous>, transform_indices = @transform_3, window_bounds = array<i64: 8, 128>}, {transform_indices = @transform_4, window_bounds = array<i64: 8, 128>}]} {
    %c0 = arith.constant 0 : index
    %c0_0 = arith.constant 0 : index
    %0 = vector.load %arg3[%c0, %c0_0] : memref<64x128xbf16, #tpu.memory_space<vmem>>, vector<16x96xbf16>
    %c16 = arith.constant 16 : index
    %c0_1 = arith.constant 0 : index
    %1 = vector.load %arg3[%c16, %c0_1] : memref<64x128xbf16, #tpu.memory_space<vmem>>, vector<16x48xbf16>
    %c32 = arith.constant 32 : index
    %c0_2 = arith.constant 0 : index
    %2 = vector.load %arg3[%c32, %c0_2] : memref<64x128xbf16, #tpu.memory_space<vmem>>, vector<32x128xbf16>
    %c0_3 = arith.constant 0 : index
    %c0_4 = arith.constant 0 : index
    %3 = vector.load %arg4[%c0_3, %c0_4] : memref<8x128xf32, #tpu.memory_space<vmem>>, vector<1x128xf32>
    %c1 = arith.constant 1 : index
    %c0_5 = arith.constant 0 : index
    %4 = vector.load %arg4[%c1, %c0_5] : memref<8x128xf32, #tpu.memory_space<vmem>>, vector<1x16xf32>
    %5 = vector.shape_cast %4 : vector<1x16xf32> to vector<1x16xf32>
    %6 = vector.broadcast %5 : vector<1x16xf32> to vector<8x16xf32>
    %c1_6 = arith.constant 1 : index
    %c16_7 = arith.constant 16 : index
    %7 = vector.load %arg4[%c1_6, %c16_7] : memref<8x128xf32, #tpu.memory_space<vmem>>, vector<1x16xf32>
    %8 = vector.shape_cast %7 : vector<1x16xf32> to vector<1x16xf32>
    %9 = vector.broadcast %8 : vector<1x16xf32> to vector<8x16xf32>
    %c0_8 = arith.constant 0 : index
    %c0_9 = arith.constant 0 : index
    %10 = vector.load %arg2[%c0_8, %c0_9] : memref<8x1xf32, #tpu.memory_space<vmem>>, vector<8x1xf32>
    %c0_10 = arith.constant 0 : index
    %c0_11 = arith.constant 0 : index
    %11 = vector.load %arg1[%c0_10, %c0_11] : memref<72x16xf32, #tpu.memory_space<vmem>>, vector<72x16xf32>
    %12 = arith.truncf %11 : vector<72x16xf32> to vector<72x16xbf16>
    %cst = arith.constant dense<0.000000e+00> : vector<72x96xf32>
    %13 = tpu.matmul %12, %0, %cst {dimension_numbers = #tpu.dot_dimension_numbers<[1], [0], [0], [1], [0, 0, 1, 1], [], []>} : vector<72x16xbf16>, vector<16x96xbf16>, vector<72x96xf32> -> vector<72x96xf32>
    %14 = vector.extract_strided_slice %13 {offsets = [0, 0], sizes = [64, 48], strides = [1, 1]} : vector<72x96xf32> to vector<64x48xf32>
    %15 = vector.extract_strided_slice %13 {offsets = [64, 48], sizes = [8, 48], strides = [1, 1]} : vector<72x96xf32> to vector<8x48xf32>
    %cst_12 = arith.constant 0.000000e+00 : f32
    %16 = vector.broadcast %cst_12 : f32 to vector<8x1xf32>
    %17 = arith.cmpf ogt, %10, %16 : vector<8x1xf32>
    %18 = arith.extui %17 : vector<8x1xi1> to vector<8x1xi32>
    %19 = arith.sitofp %18 : vector<8x1xi32> to vector<8x1xf32>
    %cst_13 = arith.constant 1.000000e+00 : f32
    %20 = vector.broadcast %cst_13 : f32 to vector<8x1xf32>
    %21 = arith.cmpf ogt, %10, %20 : vector<8x1xf32>
    %22 = arith.extui %21 : vector<8x1xi1> to vector<8x1xi32>
    %23 = arith.sitofp %22 : vector<8x1xi32> to vector<8x1xf32>
    %cst_14 = arith.constant 2.000000e+00 : f32
    %24 = vector.broadcast %cst_14 : f32 to vector<8x1xf32>
    %25 = arith.cmpf ogt, %10, %24 : vector<8x1xf32>
    %26 = arith.extui %25 : vector<8x1xi1> to vector<8x1xi32>
    %27 = arith.sitofp %26 : vector<8x1xi32> to vector<8x1xf32>
    %cst_15 = arith.constant 3.000000e+00 : f32
    %28 = vector.broadcast %cst_15 : f32 to vector<8x1xf32>
    %29 = arith.cmpf ogt, %10, %28 : vector<8x1xf32>
    %30 = arith.extui %29 : vector<8x1xi1> to vector<8x1xi32>
    %31 = arith.sitofp %30 : vector<8x1xi32> to vector<8x1xf32>
    %cst_16 = arith.constant 4.000000e+00 : f32
    %32 = vector.broadcast %cst_16 : f32 to vector<8x1xf32>
    %33 = arith.cmpf ogt, %10, %32 : vector<8x1xf32>
    %34 = arith.extui %33 : vector<8x1xi1> to vector<8x1xi32>
    %35 = arith.sitofp %34 : vector<8x1xi32> to vector<8x1xf32>
    %cst_17 = arith.constant 5.000000e+00 : f32
    %36 = vector.broadcast %cst_17 : f32 to vector<8x1xf32>
    %37 = arith.cmpf ogt, %10, %36 : vector<8x1xf32>
    %38 = arith.extui %37 : vector<8x1xi1> to vector<8x1xi32>
    %39 = arith.sitofp %38 : vector<8x1xi32> to vector<8x1xf32>
    %cst_18 = arith.constant 6.000000e+00 : f32
    %40 = vector.broadcast %cst_18 : f32 to vector<8x1xf32>
    %41 = arith.cmpf ogt, %10, %40 : vector<8x1xf32>
    %42 = arith.extui %41 : vector<8x1xi1> to vector<8x1xi32>
    %43 = arith.sitofp %42 : vector<8x1xi32> to vector<8x1xf32>
    %cst_19 = arith.constant 7.000000e+00 : f32
    %44 = vector.broadcast %cst_19 : f32 to vector<8x1xf32>
    %45 = arith.cmpf ogt, %10, %44 : vector<8x1xf32>
    %46 = arith.extui %45 : vector<8x1xi1> to vector<8x1xi32>
    %47 = arith.sitofp %46 : vector<8x1xi32> to vector<8x1xf32>
    %cst_20 = arith.constant 0.000000e+00 : f32
    %48 = vector.broadcast %cst_20 : f32 to vector<8x16xf32>
    %49 = vector.extract_strided_slice %14 {offsets = [0, 0], sizes = [8, 48], strides = [1, 1]} : vector<64x48xf32> to vector<8x48xf32>
    %50 = arith.truncf %48 : vector<8x16xf32> to vector<8x16xbf16>
    %cst_21 = arith.constant dense<0.000000e+00> : vector<8x48xf32>
    %51 = tpu.matmul %50, %1, %cst_21 {dimension_numbers = #tpu.dot_dimension_numbers<[1], [0], [0], [1], [0, 0, 1, 1], [], []>} : vector<8x16xbf16>, vector<16x48xbf16>, vector<8x48xf32> -> vector<8x48xf32>
    %52 = vector.extract_strided_slice %49 {offsets = [0, 0], sizes = [8, 32], strides = [1, 1]} : vector<8x48xf32> to vector<8x32xf32>
    %53 = vector.extract_strided_slice %51 {offsets = [0, 0], sizes = [8, 32], strides = [1, 1]} : vector<8x48xf32> to vector<8x32xf32>
    %54 = arith.addf %52, %53 : vector<8x32xf32>
    %55 = arith.negf %54 : vector<8x32xf32>
    %56 = math.exp %55 : vector<8x32xf32>
    %cst_22 = arith.constant 1.000000e+00 : f32
    %57 = vector.broadcast %cst_22 : f32 to vector<8x32xf32>
    %58 = arith.addf %57, %56 : vector<8x32xf32>
    %59 = arith.divf %57, %58 : vector<8x32xf32>
    %60 = vector.extract_strided_slice %59 {offsets = [0, 0], sizes = [8, 16], strides = [1, 1]} : vector<8x32xf32> to vector<8x16xf32>
    %61 = vector.extract_strided_slice %59 {offsets = [0, 16], sizes = [8, 16], strides = [1, 1]} : vector<8x32xf32> to vector<8x16xf32>
    %62 = vector.extract_strided_slice %49 {offsets = [0, 32], sizes = [8, 16], strides = [1, 1]} : vector<8x48xf32> to vector<8x16xf32>
    %63 = vector.extract_strided_slice %51 {offsets = [0, 32], sizes = [8, 16], strides = [1, 1]} : vector<8x48xf32> to vector<8x16xf32>
    %64 = arith.addf %63, %6 : vector<8x16xf32>
    %65 = arith.mulf %60, %64 : vector<8x16xf32>
    %66 = arith.addf %62, %65 : vector<8x16xf32>
    %67 = math.tanh %66 : vector<8x16xf32>
    %cst_23 = arith.constant 1.000000e+00 : f32
    %68 = vector.broadcast %cst_23 : f32 to vector<8x16xf32>
    %69 = arith.subf %68, %61 : vector<8x16xf32>
    %70 = arith.subf %67, %48 : vector<8x16xf32>
    %71 = arith.mulf %69, %70 : vector<8x16xf32>
    %72 = vector.broadcast %19 : vector<8x1xf32> to vector<8x16xf32>
    %73 = arith.mulf %72, %71 : vector<8x16xf32>
    %74 = arith.addf %48, %73 : vector<8x16xf32>
    %75 = vector.extract_strided_slice %14 {offsets = [8, 0], sizes = [8, 48], strides = [1, 1]} : vector<64x48xf32> to vector<8x48xf32>
    %76 = arith.truncf %74 : vector<8x16xf32> to vector<8x16xbf16>
    %cst_24 = arith.constant dense<0.000000e+00> : vector<8x48xf32>
    %77 = tpu.matmul %76, %1, %cst_24 {dimension_numbers = #tpu.dot_dimension_numbers<[1], [0], [0], [1], [0, 0, 1, 1], [], []>} : vector<8x16xbf16>, vector<16x48xbf16>, vector<8x48xf32> -> vector<8x48xf32>
    %78 = vector.extract_strided_slice %75 {offsets = [0, 0], sizes = [8, 32], strides = [1, 1]} : vector<8x48xf32> to vector<8x32xf32>
    %79 = vector.extract_strided_slice %77 {offsets = [0, 0], sizes = [8, 32], strides = [1, 1]} : vector<8x48xf32> to vector<8x32xf32>
    %80 = arith.addf %78, %79 : vector<8x32xf32>
    %81 = arith.negf %80 : vector<8x32xf32>
    %82 = math.exp %81 : vector<8x32xf32>
    %cst_25 = arith.constant 1.000000e+00 : f32
    %83 = vector.broadcast %cst_25 : f32 to vector<8x32xf32>
    %84 = arith.addf %83, %82 : vector<8x32xf32>
    %85 = arith.divf %83, %84 : vector<8x32xf32>
    %86 = vector.extract_strided_slice %85 {offsets = [0, 0], sizes = [8, 16], strides = [1, 1]} : vector<8x32xf32> to vector<8x16xf32>
    %87 = vector.extract_strided_slice %85 {offsets = [0, 16], sizes = [8, 16], strides = [1, 1]} : vector<8x32xf32> to vector<8x16xf32>
    %88 = vector.extract_strided_slice %75 {offsets = [0, 32], sizes = [8, 16], strides = [1, 1]} : vector<8x48xf32> to vector<8x16xf32>
    %89 = vector.extract_strided_slice %77 {offsets = [0, 32], sizes = [8, 16], strides = [1, 1]} : vector<8x48xf32> to vector<8x16xf32>
    %90 = arith.addf %89, %6 : vector<8x16xf32>
    %91 = arith.mulf %86, %90 : vector<8x16xf32>
    %92 = arith.addf %88, %91 : vector<8x16xf32>
    %93 = math.tanh %92 : vector<8x16xf32>
    %cst_26 = arith.constant 1.000000e+00 : f32
    %94 = vector.broadcast %cst_26 : f32 to vector<8x16xf32>
    %95 = arith.subf %94, %87 : vector<8x16xf32>
    %96 = arith.subf %93, %74 : vector<8x16xf32>
    %97 = arith.mulf %95, %96 : vector<8x16xf32>
    %98 = vector.broadcast %23 : vector<8x1xf32> to vector<8x16xf32>
    %99 = arith.mulf %98, %97 : vector<8x16xf32>
    %100 = arith.addf %74, %99 : vector<8x16xf32>
    %101 = vector.extract_strided_slice %14 {offsets = [16, 0], sizes = [8, 48], strides = [1, 1]} : vector<64x48xf32> to vector<8x48xf32>
    %102 = arith.truncf %100 : vector<8x16xf32> to vector<8x16xbf16>
    %cst_27 = arith.constant dense<0.000000e+00> : vector<8x48xf32>
    %103 = tpu.matmul %102, %1, %cst_27 {dimension_numbers = #tpu.dot_dimension_numbers<[1], [0], [0], [1], [0, 0, 1, 1], [], []>} : vector<8x16xbf16>, vector<16x48xbf16>, vector<8x48xf32> -> vector<8x48xf32>
    %104 = vector.extract_strided_slice %101 {offsets = [0, 0], sizes = [8, 32], strides = [1, 1]} : vector<8x48xf32> to vector<8x32xf32>
    %105 = vector.extract_strided_slice %103 {offsets = [0, 0], sizes = [8, 32], strides = [1, 1]} : vector<8x48xf32> to vector<8x32xf32>
    %106 = arith.addf %104, %105 : vector<8x32xf32>
    %107 = arith.negf %106 : vector<8x32xf32>
    %108 = math.exp %107 : vector<8x32xf32>
    %cst_28 = arith.constant 1.000000e+00 : f32
    %109 = vector.broadcast %cst_28 : f32 to vector<8x32xf32>
    %110 = arith.addf %109, %108 : vector<8x32xf32>
    %111 = arith.divf %109, %110 : vector<8x32xf32>
    %112 = vector.extract_strided_slice %111 {offsets = [0, 0], sizes = [8, 16], strides = [1, 1]} : vector<8x32xf32> to vector<8x16xf32>
    %113 = vector.extract_strided_slice %111 {offsets = [0, 16], sizes = [8, 16], strides = [1, 1]} : vector<8x32xf32> to vector<8x16xf32>
    %114 = vector.extract_strided_slice %101 {offsets = [0, 32], sizes = [8, 16], strides = [1, 1]} : vector<8x48xf32> to vector<8x16xf32>
    %115 = vector.extract_strided_slice %103 {offsets = [0, 32], sizes = [8, 16], strides = [1, 1]} : vector<8x48xf32> to vector<8x16xf32>
    %116 = arith.addf %115, %6 : vector<8x16xf32>
    %117 = arith.mulf %112, %116 : vector<8x16xf32>
    %118 = arith.addf %114, %117 : vector<8x16xf32>
    %119 = math.tanh %118 : vector<8x16xf32>
    %cst_29 = arith.constant 1.000000e+00 : f32
    %120 = vector.broadcast %cst_29 : f32 to vector<8x16xf32>
    %121 = arith.subf %120, %113 : vector<8x16xf32>
    %122 = arith.subf %119, %100 : vector<8x16xf32>
    %123 = arith.mulf %121, %122 : vector<8x16xf32>
    %124 = vector.broadcast %27 : vector<8x1xf32> to vector<8x16xf32>
    %125 = arith.mulf %124, %123 : vector<8x16xf32>
    %126 = arith.addf %100, %125 : vector<8x16xf32>
    %127 = vector.extract_strided_slice %14 {offsets = [24, 0], sizes = [8, 48], strides = [1, 1]} : vector<64x48xf32> to vector<8x48xf32>
    %128 = arith.truncf %126 : vector<8x16xf32> to vector<8x16xbf16>
    %cst_30 = arith.constant dense<0.000000e+00> : vector<8x48xf32>
    %129 = tpu.matmul %128, %1, %cst_30 {dimension_numbers = #tpu.dot_dimension_numbers<[1], [0], [0], [1], [0, 0, 1, 1], [], []>} : vector<8x16xbf16>, vector<16x48xbf16>, vector<8x48xf32> -> vector<8x48xf32>
    %130 = vector.extract_strided_slice %127 {offsets = [0, 0], sizes = [8, 32], strides = [1, 1]} : vector<8x48xf32> to vector<8x32xf32>
    %131 = vector.extract_strided_slice %129 {offsets = [0, 0], sizes = [8, 32], strides = [1, 1]} : vector<8x48xf32> to vector<8x32xf32>
    %132 = arith.addf %130, %131 : vector<8x32xf32>
    %133 = arith.negf %132 : vector<8x32xf32>
    %134 = math.exp %133 : vector<8x32xf32>
    %cst_31 = arith.constant 1.000000e+00 : f32
    %135 = vector.broadcast %cst_31 : f32 to vector<8x32xf32>
    %136 = arith.addf %135, %134 : vector<8x32xf32>
    %137 = arith.divf %135, %136 : vector<8x32xf32>
    %138 = vector.extract_strided_slice %137 {offsets = [0, 0], sizes = [8, 16], strides = [1, 1]} : vector<8x32xf32> to vector<8x16xf32>
    %139 = vector.extract_strided_slice %137 {offsets = [0, 16], sizes = [8, 16], strides = [1, 1]} : vector<8x32xf32> to vector<8x16xf32>
    %140 = vector.extract_strided_slice %127 {offsets = [0, 32], sizes = [8, 16], strides = [1, 1]} : vector<8x48xf32> to vector<8x16xf32>
    %141 = vector.extract_strided_slice %129 {offsets = [0, 32], sizes = [8, 16], strides = [1, 1]} : vector<8x48xf32> to vector<8x16xf32>
    %142 = arith.addf %141, %6 : vector<8x16xf32>
    %143 = arith.mulf %138, %142 : vector<8x16xf32>
    %144 = arith.addf %140, %143 : vector<8x16xf32>
    %145 = math.tanh %144 : vector<8x16xf32>
    %cst_32 = arith.constant 1.000000e+00 : f32
    %146 = vector.broadcast %cst_32 : f32 to vector<8x16xf32>
    %147 = arith.subf %146, %139 : vector<8x16xf32>
    %148 = arith.subf %145, %126 : vector<8x16xf32>
    %149 = arith.mulf %147, %148 : vector<8x16xf32>
    %150 = vector.broadcast %31 : vector<8x1xf32> to vector<8x16xf32>
    %151 = arith.mulf %150, %149 : vector<8x16xf32>
    %152 = arith.addf %126, %151 : vector<8x16xf32>
    %153 = vector.extract_strided_slice %14 {offsets = [32, 0], sizes = [8, 48], strides = [1, 1]} : vector<64x48xf32> to vector<8x48xf32>
    %154 = arith.truncf %152 : vector<8x16xf32> to vector<8x16xbf16>
    %cst_33 = arith.constant dense<0.000000e+00> : vector<8x48xf32>
    %155 = tpu.matmul %154, %1, %cst_33 {dimension_numbers = #tpu.dot_dimension_numbers<[1], [0], [0], [1], [0, 0, 1, 1], [], []>} : vector<8x16xbf16>, vector<16x48xbf16>, vector<8x48xf32> -> vector<8x48xf32>
    %156 = vector.extract_strided_slice %153 {offsets = [0, 0], sizes = [8, 32], strides = [1, 1]} : vector<8x48xf32> to vector<8x32xf32>
    %157 = vector.extract_strided_slice %155 {offsets = [0, 0], sizes = [8, 32], strides = [1, 1]} : vector<8x48xf32> to vector<8x32xf32>
    %158 = arith.addf %156, %157 : vector<8x32xf32>
    %159 = arith.negf %158 : vector<8x32xf32>
    %160 = math.exp %159 : vector<8x32xf32>
    %cst_34 = arith.constant 1.000000e+00 : f32
    %161 = vector.broadcast %cst_34 : f32 to vector<8x32xf32>
    %162 = arith.addf %161, %160 : vector<8x32xf32>
    %163 = arith.divf %161, %162 : vector<8x32xf32>
    %164 = vector.extract_strided_slice %163 {offsets = [0, 0], sizes = [8, 16], strides = [1, 1]} : vector<8x32xf32> to vector<8x16xf32>
    %165 = vector.extract_strided_slice %163 {offsets = [0, 16], sizes = [8, 16], strides = [1, 1]} : vector<8x32xf32> to vector<8x16xf32>
    %166 = vector.extract_strided_slice %153 {offsets = [0, 32], sizes = [8, 16], strides = [1, 1]} : vector<8x48xf32> to vector<8x16xf32>
    %167 = vector.extract_strided_slice %155 {offsets = [0, 32], sizes = [8, 16], strides = [1, 1]} : vector<8x48xf32> to vector<8x16xf32>
    %168 = arith.addf %167, %6 : vector<8x16xf32>
    %169 = arith.mulf %164, %168 : vector<8x16xf32>
    %170 = arith.addf %166, %169 : vector<8x16xf32>
    %171 = math.tanh %170 : vector<8x16xf32>
    %cst_35 = arith.constant 1.000000e+00 : f32
    %172 = vector.broadcast %cst_35 : f32 to vector<8x16xf32>
    %173 = arith.subf %172, %165 : vector<8x16xf32>
    %174 = arith.subf %171, %152 : vector<8x16xf32>
    %175 = arith.mulf %173, %174 : vector<8x16xf32>
    %176 = vector.broadcast %35 : vector<8x1xf32> to vector<8x16xf32>
    %177 = arith.mulf %176, %175 : vector<8x16xf32>
    %178 = arith.addf %152, %177 : vector<8x16xf32>
    %179 = vector.extract_strided_slice %14 {offsets = [40, 0], sizes = [8, 48], strides = [1, 1]} : vector<64x48xf32> to vector<8x48xf32>
    %180 = arith.truncf %178 : vector<8x16xf32> to vector<8x16xbf16>
    %cst_36 = arith.constant dense<0.000000e+00> : vector<8x48xf32>
    %181 = tpu.matmul %180, %1, %cst_36 {dimension_numbers = #tpu.dot_dimension_numbers<[1], [0], [0], [1], [0, 0, 1, 1], [], []>} : vector<8x16xbf16>, vector<16x48xbf16>, vector<8x48xf32> -> vector<8x48xf32>
    %182 = vector.extract_strided_slice %179 {offsets = [0, 0], sizes = [8, 32], strides = [1, 1]} : vector<8x48xf32> to vector<8x32xf32>
    %183 = vector.extract_strided_slice %181 {offsets = [0, 0], sizes = [8, 32], strides = [1, 1]} : vector<8x48xf32> to vector<8x32xf32>
    %184 = arith.addf %182, %183 : vector<8x32xf32>
    %185 = arith.negf %184 : vector<8x32xf32>
    %186 = math.exp %185 : vector<8x32xf32>
    %cst_37 = arith.constant 1.000000e+00 : f32
    %187 = vector.broadcast %cst_37 : f32 to vector<8x32xf32>
    %188 = arith.addf %187, %186 : vector<8x32xf32>
    %189 = arith.divf %187, %188 : vector<8x32xf32>
    %190 = vector.extract_strided_slice %189 {offsets = [0, 0], sizes = [8, 16], strides = [1, 1]} : vector<8x32xf32> to vector<8x16xf32>
    %191 = vector.extract_strided_slice %189 {offsets = [0, 16], sizes = [8, 16], strides = [1, 1]} : vector<8x32xf32> to vector<8x16xf32>
    %192 = vector.extract_strided_slice %179 {offsets = [0, 32], sizes = [8, 16], strides = [1, 1]} : vector<8x48xf32> to vector<8x16xf32>
    %193 = vector.extract_strided_slice %181 {offsets = [0, 32], sizes = [8, 16], strides = [1, 1]} : vector<8x48xf32> to vector<8x16xf32>
    %194 = arith.addf %193, %6 : vector<8x16xf32>
    %195 = arith.mulf %190, %194 : vector<8x16xf32>
    %196 = arith.addf %192, %195 : vector<8x16xf32>
    %197 = math.tanh %196 : vector<8x16xf32>
    %cst_38 = arith.constant 1.000000e+00 : f32
    %198 = vector.broadcast %cst_38 : f32 to vector<8x16xf32>
    %199 = arith.subf %198, %191 : vector<8x16xf32>
    %200 = arith.subf %197, %178 : vector<8x16xf32>
    %201 = arith.mulf %199, %200 : vector<8x16xf32>
    %202 = vector.broadcast %39 : vector<8x1xf32> to vector<8x16xf32>
    %203 = arith.mulf %202, %201 : vector<8x16xf32>
    %204 = arith.addf %178, %203 : vector<8x16xf32>
    %205 = vector.extract_strided_slice %14 {offsets = [48, 0], sizes = [8, 48], strides = [1, 1]} : vector<64x48xf32> to vector<8x48xf32>
    %206 = arith.truncf %204 : vector<8x16xf32> to vector<8x16xbf16>
    %cst_39 = arith.constant dense<0.000000e+00> : vector<8x48xf32>
    %207 = tpu.matmul %206, %1, %cst_39 {dimension_numbers = #tpu.dot_dimension_numbers<[1], [0], [0], [1], [0, 0, 1, 1], [], []>} : vector<8x16xbf16>, vector<16x48xbf16>, vector<8x48xf32> -> vector<8x48xf32>
    %208 = vector.extract_strided_slice %205 {offsets = [0, 0], sizes = [8, 32], strides = [1, 1]} : vector<8x48xf32> to vector<8x32xf32>
    %209 = vector.extract_strided_slice %207 {offsets = [0, 0], sizes = [8, 32], strides = [1, 1]} : vector<8x48xf32> to vector<8x32xf32>
    %210 = arith.addf %208, %209 : vector<8x32xf32>
    %211 = arith.negf %210 : vector<8x32xf32>
    %212 = math.exp %211 : vector<8x32xf32>
    %cst_40 = arith.constant 1.000000e+00 : f32
    %213 = vector.broadcast %cst_40 : f32 to vector<8x32xf32>
    %214 = arith.addf %213, %212 : vector<8x32xf32>
    %215 = arith.divf %213, %214 : vector<8x32xf32>
    %216 = vector.extract_strided_slice %215 {offsets = [0, 0], sizes = [8, 16], strides = [1, 1]} : vector<8x32xf32> to vector<8x16xf32>
    %217 = vector.extract_strided_slice %215 {offsets = [0, 16], sizes = [8, 16], strides = [1, 1]} : vector<8x32xf32> to vector<8x16xf32>
    %218 = vector.extract_strided_slice %205 {offsets = [0, 32], sizes = [8, 16], strides = [1, 1]} : vector<8x48xf32> to vector<8x16xf32>
    %219 = vector.extract_strided_slice %207 {offsets = [0, 32], sizes = [8, 16], strides = [1, 1]} : vector<8x48xf32> to vector<8x16xf32>
    %220 = arith.addf %219, %6 : vector<8x16xf32>
    %221 = arith.mulf %216, %220 : vector<8x16xf32>
    %222 = arith.addf %218, %221 : vector<8x16xf32>
    %223 = math.tanh %222 : vector<8x16xf32>
    %cst_41 = arith.constant 1.000000e+00 : f32
    %224 = vector.broadcast %cst_41 : f32 to vector<8x16xf32>
    %225 = arith.subf %224, %217 : vector<8x16xf32>
    %226 = arith.subf %223, %204 : vector<8x16xf32>
    %227 = arith.mulf %225, %226 : vector<8x16xf32>
    %228 = vector.broadcast %43 : vector<8x1xf32> to vector<8x16xf32>
    %229 = arith.mulf %228, %227 : vector<8x16xf32>
    %230 = arith.addf %204, %229 : vector<8x16xf32>
    %231 = vector.extract_strided_slice %14 {offsets = [56, 0], sizes = [8, 48], strides = [1, 1]} : vector<64x48xf32> to vector<8x48xf32>
    %232 = arith.truncf %230 : vector<8x16xf32> to vector<8x16xbf16>
    %cst_42 = arith.constant dense<0.000000e+00> : vector<8x48xf32>
    %233 = tpu.matmul %232, %1, %cst_42 {dimension_numbers = #tpu.dot_dimension_numbers<[1], [0], [0], [1], [0, 0, 1, 1], [], []>} : vector<8x16xbf16>, vector<16x48xbf16>, vector<8x48xf32> -> vector<8x48xf32>
    %234 = vector.extract_strided_slice %231 {offsets = [0, 0], sizes = [8, 32], strides = [1, 1]} : vector<8x48xf32> to vector<8x32xf32>
    %235 = vector.extract_strided_slice %233 {offsets = [0, 0], sizes = [8, 32], strides = [1, 1]} : vector<8x48xf32> to vector<8x32xf32>
    %236 = arith.addf %234, %235 : vector<8x32xf32>
    %237 = arith.negf %236 : vector<8x32xf32>
    %238 = math.exp %237 : vector<8x32xf32>
    %cst_43 = arith.constant 1.000000e+00 : f32
    %239 = vector.broadcast %cst_43 : f32 to vector<8x32xf32>
    %240 = arith.addf %239, %238 : vector<8x32xf32>
    %241 = arith.divf %239, %240 : vector<8x32xf32>
    %242 = vector.extract_strided_slice %241 {offsets = [0, 0], sizes = [8, 16], strides = [1, 1]} : vector<8x32xf32> to vector<8x16xf32>
    %243 = vector.extract_strided_slice %241 {offsets = [0, 16], sizes = [8, 16], strides = [1, 1]} : vector<8x32xf32> to vector<8x16xf32>
    %244 = vector.extract_strided_slice %231 {offsets = [0, 32], sizes = [8, 16], strides = [1, 1]} : vector<8x48xf32> to vector<8x16xf32>
    %245 = vector.extract_strided_slice %233 {offsets = [0, 32], sizes = [8, 16], strides = [1, 1]} : vector<8x48xf32> to vector<8x16xf32>
    %246 = arith.addf %245, %6 : vector<8x16xf32>
    %247 = arith.mulf %242, %246 : vector<8x16xf32>
    %248 = arith.addf %244, %247 : vector<8x16xf32>
    %249 = math.tanh %248 : vector<8x16xf32>
    %cst_44 = arith.constant 1.000000e+00 : f32
    %250 = vector.broadcast %cst_44 : f32 to vector<8x16xf32>
    %251 = arith.subf %250, %243 : vector<8x16xf32>
    %252 = arith.subf %249, %230 : vector<8x16xf32>
    %253 = arith.mulf %251, %252 : vector<8x16xf32>
    %254 = vector.broadcast %47 : vector<8x1xf32> to vector<8x16xf32>
    %255 = arith.mulf %254, %253 : vector<8x16xf32>
    %256 = arith.addf %230, %255 : vector<8x16xf32>
    %257 = vector.extract_strided_slice %15 {offsets = [0, 0], sizes = [8, 32], strides = [1, 1]} : vector<8x48xf32> to vector<8x32xf32>
    %258 = arith.negf %257 : vector<8x32xf32>
    %259 = math.exp %258 : vector<8x32xf32>
    %cst_45 = arith.constant 1.000000e+00 : f32
    %260 = vector.broadcast %cst_45 : f32 to vector<8x32xf32>
    %261 = arith.addf %260, %259 : vector<8x32xf32>
    %262 = arith.divf %260, %261 : vector<8x32xf32>
    %263 = vector.extract_strided_slice %262 {offsets = [0, 0], sizes = [8, 16], strides = [1, 1]} : vector<8x32xf32> to vector<8x16xf32>
    %264 = vector.extract_strided_slice %262 {offsets = [0, 16], sizes = [8, 16], strides = [1, 1]} : vector<8x32xf32> to vector<8x16xf32>
    %265 = vector.extract_strided_slice %15 {offsets = [0, 32], sizes = [8, 16], strides = [1, 1]} : vector<8x48xf32> to vector<8x16xf32>
    %266 = arith.mulf %263, %9 : vector<8x16xf32>
    %267 = arith.addf %265, %266 : vector<8x16xf32>
    %268 = math.tanh %267 : vector<8x16xf32>
    %cst_46 = arith.constant 1.000000e+00 : f32
    %269 = vector.broadcast %cst_46 : f32 to vector<8x16xf32>
    %270 = arith.subf %269, %264 : vector<8x16xf32>
    %271 = arith.mulf %270, %268 : vector<8x16xf32>
    %272 = tpu.concatenate %256, %271 in 1 : vector<8x16xf32>, vector<8x16xf32> -> vector<8x32xf32>
    %273 = arith.truncf %272 : vector<8x32xf32> to vector<8x32xbf16>
    %cst_47 = arith.constant dense<0.000000e+00> : vector<8x128xf32>
    %274 = tpu.matmul %273, %2, %cst_47 {dimension_numbers = #tpu.dot_dimension_numbers<[1], [0], [0], [1], [0, 0, 1, 1], [], []>} : vector<8x32xbf16>, vector<32x128xbf16>, vector<8x128xf32> -> vector<8x128xf32>
    %275 = vector.broadcast %3 : vector<1x128xf32> to vector<8x128xf32>
    %276 = arith.addf %274, %275 : vector<8x128xf32>
    %c0_48 = arith.constant 0 : index
    %c0_49 = arith.constant 0 : index
    %277 = vector.load %arg5[%c0_48, %c0_49] : memref<8x128xf32, #tpu.memory_space<vmem>>, vector<8x128xf32>
    tpu.vector_store %arg5[%c0_48, %c0_49], %276 {strides = array<i32>} : memref<8x128xf32, #tpu.memory_space<vmem>>, vector<8x128xf32>,
    return
  }
  func.func @transform_0(%arg0: i32) -> (i32, i32) {
    %c0_i32 = arith.constant 0 : i32
    %c0_i32_0 = arith.constant 0 : i32
    return %arg0, %c0_i32 : i32, i32
  }
  func.func @transform_1(%arg0: i32) -> (i32, i32) {
    %c0_i32 = arith.constant 0 : i32
    %c0_i32_0 = arith.constant 0 : i32
    return %arg0, %c0_i32 : i32, i32
  }
  func.func @transform_2(%arg0: i32) -> (i32, i32) {
    %c0_i32 = arith.constant 0 : i32
    %c0_i32_0 = arith.constant 0 : i32
    %c0_i32_1 = arith.constant 0 : i32
    return %c0_i32, %c0_i32_0 : i32, i32
  }
  func.func @transform_3(%arg0: i32) -> (i32, i32) {
    %c0_i32 = arith.constant 0 : i32
    %c0_i32_0 = arith.constant 0 : i32
    %c0_i32_1 = arith.constant 0 : i32
    return %c0_i32, %c0_i32_0 : i32, i32
  }
  func.func @transform_4(%arg0: i32) -> (i32, i32) {
    %c0_i32 = arith.constant 0 : i32
    %c0_i32_0 = arith.constant 0 : i32
    return %arg0, %c0_i32 : i32, i32
  }
}

</mosaic_0001>

<llo_original>
// kernel: tpu_custom_call.1
$region0: #{tpu_custom_call.1}
  #allocation0 [shape = 'u32[]', space=smem, size = 0x4, offset = 0x4, fixed_abs, tag = 'smem constant byte address 0x4 - core index']
  #allocation1 [shape = 'u32[144,128]{1,0:T(1,128)}', space=vmem, size = 0x12000, scoped, tag = 'internal scratch']
  %s0 = inlined_call_operand.vmem [shape: f32[72,16], index: 0, kind: input, shape index: {}]
  %s1 = inlined_call_operand.vmem [shape: f32[8,1], index: 1, kind: input, shape index: {}]
  %s2 = inlined_call_operand.vmem [shape: bf16[64,128], index: 2, kind: input, shape index: {}]
  %s3 = inlined_call_operand.vmem [shape: f32[8,128], index: 3, kind: input, shape index: {}]
  %s4 = inlined_call_operand.hbm [shape: f32[8,128], index: 4, kind: output, shape index: {}]
  %s5 = sld [smem:[#allocation0]]
  $region26: #{tpu_custom_call.1} parent=0
    _
  %s7 = ssub.s32 1, %s5
  %s8 = scalar_select 0, %s7, %s5
  $region1: #{tpu_custom_call.1} parent=0
    #allocation2 [shape = 'u8[4096]{0}', space=vmem, size = 0x1000, scoped, tag = 'output window, operand 0, single buffered']
    #allocation3 [shape = 's32[1]{0}', space=sflag, size = 0x4, scoped, tag = 'scoped memory for tpu_custom_call.1']
    %9 = vsyncpa [#allocation3], 0
    // Predicated region
    $region2: #{tpu_custom_call.1} parent=1 // pred_check
      _
    $region3: #{tpu_custom_call.1} parent=1 // pred_check_branch
      %11 = sbr.rel (0) target = $region5
    $region4: #{tpu_custom_call.1} parent=1 // pred_region
      _
    $region5: #{tpu_custom_call.1} parent=1 // pred_fallthru
      _
    // Predicated region
    $region6: #{tpu_custom_call.1} parent=1 // pred_check
      _
    $region7: #{tpu_custom_call.1} parent=1 // pred_check_branch
      %13 = sbr.rel (0) target = $region9
    $region8: #{tpu_custom_call.1} parent=1 // pred_region
      _
    $region9: #{tpu_custom_call.1} parent=1 // pred_fallthru
      _
    // Predicated region
    $region10: #{tpu_custom_call.1} parent=1 // pred_check
      _
    $region11: #{tpu_custom_call.1} parent=1 // pred_check_branch
      %15 = sbr.rel (0) target = $region13
    $region12: #{tpu_custom_call.1} parent=1 // pred_region
      _
    $region13: #{tpu_custom_call.1} parent=1 // pred_fallthru
      _
    // Predicated region
    $region14: #{tpu_custom_call.1} parent=1 // pred_check
      _
    $region15: #{tpu_custom_call.1} parent=1 // pred_check_branch
      %17 = sbr.rel (0) target = $region17
    $region16: #{tpu_custom_call.1} parent=1 // pred_region
      _
    $region17: #{tpu_custom_call.1} parent=1 // pred_fallthru
      _
    %v19 = vld [vmem:[%s2] sm:$0xf]
    %v20 = vld [vmem:[%s2 + $0x4] sm:$0xf]
    %v21 = vld [vmem:[%s2 + $0x8] sm:$0xf]
    %v22 = vld [vmem:[%s2 + $0xc] sm:$0xf]
    %v23 = vld [vmem:[%s2 + $0x10] sm:$0xf]
    %v24 = vld [vmem:[%s2 + $0x14] sm:$0xf]
    %v25 = vld [vmem:[%s2 + $0x18] sm:$0xf]
    %v26 = vld [vmem:[%s2 + $0x1c] sm:$0xf]
    %v27 = vld [vmem:[%s3] sm:$0x1]
    %v28 = vld [vmem:[%s3 + $0x1] sm:$0x1]
    %v29 = vlaneseq
    %v30 = vshrl.u32 %v29, 7
    %v31 = vsub.s32 0, %v30
    %v32 = vrot.slane %v28, %v31
    %v33 = vld [vmem:[%s1] sm:$0xff]
    %v34 = vld [vmem:[%s0] sm:$0xff]
    %v35 = vld [vmem:[%s0 + $0x8] sm:$0xff]
    %v36 = vld [vmem:[%s0 + $0x10] sm:$0xff]
    %v37 = vld [vmem:[%s0 + $0x18] sm:$0xff]
    %v38 = vld [vmem:[%s0 + $0x20] sm:$0xff]
    %v39 = vld [vmem:[%s0 + $0x28] sm:$0xff]
    %v40 = vld [vmem:[%s0 + $0x30] sm:$0xff]
    %v41 = vld [vmem:[%s0 + $0x38] sm:$0xff]
    %v42 = vld [vmem:[%s0 + $0x40] sm:$0xff]
    %v43 = vpack.c.bf16 %v35, %v34
    %v44 = vpack.c.bf16 %v37, %v36
    %v45 = vpack.c.bf16 %v39, %v38
    %v46 = vpack.c.bf16 %v41, %v40
    %v47 = vpack.c.bf16 %v42, %v42
    %v50 = vunpack.c.l.b16 %v19
    %v51 = vunpack.c.l.b16 %v20
    %v52 = vpack.c.b16 %v51, %v50
    %vm54 = vcmask 130048
    %v56 = vsel %vm54, %v43, 0
    %v59 = vsel %vm54, %v44, 0
    %v62 = vsel %vm54, %v45, 0
    %v65 = vsel %vm54, %v46, 0
    %v68 = vsel %vm54, %v47, 0
    %70 = vmatprep.subr.bf16.mxu0 0
    %71 = vmatpush1.bf16.msra.mxu0 %v52
    %72 = vmatprep.subr.bf16.mxu0 0
    %73 = vmatpush1.bf16.msra.mxu0 0
    %74 = vmatprep.subr.bf16.mxu0 0
    %75 = vmatpush1.bf16.msra.mxu0 0
    %76 = vmatprep.subr.bf16.mxu0 0
    %77 = vmatpush1.bf16.msra.mxu0 0
    %78 = vmatprep.subr.bf16.mxu0 0
    %79 = vmatpush1.bf16.msra.mxu0 0
    %80 = vmatprep.subr.bf16.mxu0 0
    %81 = vmatpush1.bf16.msra.mxu0 0
    %82 = vmatprep.subr.bf16.mxu0 0
    %83 = vmatpush1.bf16.msra.mxu0 0
    %84 = vmatprep.subr.bf16.mxu0 0
    %85 = vmatpush1.bf16.msra.mxu0 0
    %86 = vmatprep.subr.bf16.mxu0 0
    %87 = vmatpush1.bf16.msra.mxu0 0
    %88 = vmatprep.subr.bf16.mxu0 0
    %89 = vmatpush1.bf16.msra.mxu0 0
    %90 = vmatprep.subr.bf16.mxu0 0
    %91 = vmatpush1.bf16.msra.mxu0 0
    %92 = vmatprep.subr.bf16.mxu0 0
    %93 = vmatpush1.bf16.msra.mxu0 0
    %94 = vmatprep.subr.bf16.mxu0 0
    %95 = vmatpush1.bf16.msra.mxu0 0
    %96 = vmatprep.subr.bf16.mxu0 0
    %97 = vmatpush1.bf16.msra.mxu0 0
    %98 = vmatprep.subr.bf16.mxu0 0
    %99 = vmatpush1.bf16.msra.mxu0 0
    %100 = vmatprep.subr.bf16.mxu0 0
    %101 = vmatpush1.bf16.msra.mxu0 0
    %102 = vmatprep.mubr.bf16.mxu0 0
    %103 = vmatmul.mubr.bf16.gmra.mrb[0].mxu0 %v56
    %v104 = vpop.f32.mrb[0].mxu0
    %v105 = vadd.f32 0.0, %v104
    %v106 = vpop.f32.mrb[0].mxu0
    %v107 = vpop.f32.mrb[0].mxu0
    %v108 = vadd.f32 0.0, %v107
    %v109 = vpop.f32.mrb[0].mxu0
    %110 = vmatprep.mubr.bf16.mxu0 0
    %111 = vmatmul.mubr.bf16.gmra.mrb[0].mxu0 %v59
    %v112 = vpop.f32.mrb[0].mxu0
    %v113 = vadd.f32 0.0, %v112
    %v114 = vpop.f32.mrb[0].mxu0
    %v115 = vpop.f32.mrb[0].mxu0
    %v116 = vadd.f32 0.0, %v115
    %v117 = vpop.f32.mrb[0].mxu0
    %118 = vmatprep.mubr.bf16.mxu0 0
    %119 = vmatmul.mubr.bf16.gmra.mrb[0].mxu0 %v62
    %v120 = vpop.f32.mrb[0].mxu0
    %v121 = vadd.f32 0.0, %v120
    %v122 = vpop.f32.mrb[0].mxu0
    %v123 = vpop.f32.mrb[0].mxu0
    %v124 = vadd.f32 0.0, %v123
    %v125 = vpop.f32.mrb[0].mxu0
    %126 = vmatprep.mubr.bf16.mxu0 0
    %127 = vmatmul.mubr.bf16.gmra.mrb[0].mxu0 %v65
    %v128 = vpop.f32.mrb[0].mxu0
    %v129 = vadd.f32 0.0, %v128
    %v130 = vpop.f32.mrb[0].mxu0
    %v131 = vpop.f32.mrb[0].mxu0
    %v132 = vadd.f32 0.0, %v131
    %v133 = vpop.f32.mrb[0].mxu0
    %134 = vmatprep.mubr.bf16.mxu0 0
    %135 = vmatmul.mubr.bf16.gmra.mrb[0].mxu0 %v68
    %v136 = vpop.f32.mrb[0].mxu0
    %v137 = vadd.f32 0.0, %v136
    %v138 = vpop.f32.mrb[0].mxu0
    %v139 = vpop.f32.mrb[0].mxu0
    %v140 = vpop.f32.mrb[0].mxu0
    %141 = vdwg.mxu0
    %vm142 = vcmp.gt.f32.partialorder %v33, 0.0
    %v143 = vsel %vm142, 1, 0
    %v144 = vcvt.s32.f32 %v143
    %vm145 = vcmp.gt.f32.partialorder %v33, 1.0
    %v146 = vsel %vm145, 1, 0
    %v147 = vcvt.s32.f32 %v146
    %vm148 = vcmp.gt.f32.partialorder %v33, 2.0
    %v149 = vsel %vm148, 1, 0
    %v150 = vcvt.s32.f32 %v149
    %vm151 = vcmp.gt.f32.partialorder %v33, 3.0
    %v152 = vsel %vm151, 1, 0
    %v153 = vcvt.s32.f32 %v152
    %vm154 = vcmp.gt.f32.partialorder %v33, 4.0
    %v155 = vsel %vm154, 1, 0
    %v156 = vcvt.s32.f32 %v155
    %vm157 = vcmp.gt.f32.partialorder %v33, 5.0
    %v158 = vsel %vm157, 1, 0
    %v159 = vcvt.s32.f32 %v158
    %vm160 = vcmp.gt.f32.partialorder %v33, 6.0
    %v161 = vsel %vm160, 1, 0
    %v162 = vcvt.s32.f32 %v161
    %vm163 = vcmp.gt.f32.partialorder %v33, 7.0
    %v164 = vsel %vm163, 1, 0
    %v165 = vcvt.s32.f32 %v164
    %v168 = vunpack.c.l.b16 %v21
    %v169 = vunpack.c.l.b16 %v22
    %v170 = vpack.c.b16 %v169, %v168
    %v173 = vsel %vm54, 0, 0
    %175 = vmatprep.subr.bf16.mxu0 0
    %176 = vmatpush1.bf16.msra.mxu0 %v170
    %177 = vmatprep.subr.bf16.mxu0 0
    %178 = vmatpush1.bf16.msra.mxu0 0
    %179 = vmatprep.subr.bf16.mxu0 0
    %180 = vmatpush1.bf16.msra.mxu0 0
    %181 = vmatprep.subr.bf16.mxu0 0
    %182 = vmatpush1.bf16.msra.mxu0 0
    %183 = vmatprep.subr.bf16.mxu0 0
    %184 = vmatpush1.bf16.msra.mxu0 0
    %185 = vmatprep.subr.bf16.mxu0 0
    %186 = vmatpush1.bf16.msra.mxu0 0
    %187 = vmatprep.subr.bf16.mxu0 0
    %188 = vmatpush1.bf16.msra.mxu0 0
    %189 = vmatprep.subr.bf16.mxu0 0
    %190 = vmatpush1.bf16.msra.mxu0 0
    %191 = vmatprep.subr.bf16.mxu0 0
    %192 = vmatpush1.bf16.msra.mxu0 0
    %193 = vmatprep.subr.bf16.mxu0 0
    %194 = vmatpush1.bf16.msra.mxu0 0
    %195 = vmatprep.subr.bf16.mxu0 0
    %196 = vmatpush1.bf16.msra.mxu0 0
    %197 = vmatprep.subr.bf16.mxu0 0
    %198 = vmatpush1.bf16.msra.mxu0 0
    %199 = vmatprep.subr.bf16.mxu0 0
    %200 = vmatpush1.bf16.msra.mxu0 0
    %201 = vmatprep.subr.bf16.mxu0 0
    %202 = vmatpush1.bf16.msra.mxu0 0
    %203 = vmatprep.subr.bf16.mxu0 0
    %204 = vmatpush1.bf16.msra.mxu0 0
    %205 = vmatprep.subr.bf16.mxu0 0
    %206 = vmatpush1.bf16.msra.mxu0 0
    %207 = vmatprep.mubr.bf16.mxu0 0
    %208 = vmatmul.mubr.bf16.gmra.mrb[0].mxu0 %v173
    %v209 = vpop.f32.mrb[0].mxu0
    %v210 = vadd.f32 0.0, %v209
    %v211 = vpop.f32.mrb[0].mxu0
    %v212 = vpop.f32.mrb[0].mxu0
    %v213 = vpop.f32.mrb[0].mxu0
    %214 = vdwg.mxu0
    %v215 = vadd.f32 %v105, %v210
    %v216 = vxor.u32 %v215, 2147483648
    %v217 = vmul.f32 %v216, 1.442695
    %v218 = vpow.pop %v217
    %v219 = vadd.f32 %v218, 1.0
    %v220 = vrcp.pop %v219
    %v221 = vmul.f32 1.0, %v220
    %223 = vrot.lane.b32.xlu0 %v32, 32
    %v224 = vpop.permute.xlu0 %223
    %v226 = vadd.f32 %v210, %v224
    %228 = vrot.lane.b32.xlu0 %v226, 96
    %v229 = vpop.permute.xlu0 %228
    %v231 = vmul.f32 %v221, %v229
    %233 = vrot.lane.b32.xlu0 %v231, 32
    %v234 = vpop.permute.xlu0 %233
    %v236 = vadd.f32 %v105, %v234
    %v237 = vtanh.pop %v236
    %v238 = vsub.f32 1.0, %v221
    %240 = vrot.lane.b32.xlu0 %v237, 112
    %v241 = vpop.permute.xlu0 %240
    %v243 = vmul.f32 %v238, %v241
    %245 = vset.pattern.permute.xlu0 0
    %246 = vperm.xlu0 %245, %v144
    %v247 = vpop.permute.xlu0 %246
    %v249 = vmul.f32 %v247, %v243
    %v250 = vadd.f32 %v249, 0.0
    %v251 = vpack.c.bf16 %v250, %v250
    %253 = vrot.lane.b32.xlu0 %v251, 112
    %v254 = vpop.permute.xlu0 %253
    %v256 = vsel %vm54, %v254, 0
    %258 = vmatprep.subr.bf16.mxu0 0
    %259 = vmatpush1.bf16.msra.mxu0 %v170
    %260 = vmatprep.subr.bf16.mxu0 0
    %261 = vmatpush1.bf16.msra.mxu0 0
    %262 = vmatprep.subr.bf16.mxu0 0
    %263 = vmatpush1.bf16.msra.mxu0 0
    %264 = vmatprep.subr.bf16.mxu0 0
    %265 = vmatpush1.bf16.msra.mxu0 0
    %266 = vmatprep.subr.bf16.mxu0 0
    %267 = vmatpush1.bf16.msra.mxu0 0
    %268 = vmatprep.subr.bf16.mxu0 0
    %269 = vmatpush1.bf16.msra.mxu0 0
    %270 = vmatprep.subr.bf16.mxu0 0
    %271 = vmatpush1.bf16.msra.mxu0 0
    %272 = vmatprep.subr.bf16.mxu0 0
    %273 = vmatpush1.bf16.msra.mxu0 0
    %274 = vmatprep.subr.bf16.mxu0 0
    %275 = vmatpush1.bf16.msra.mxu0 0
    %276 = vmatprep.subr.bf16.mxu0 0
    %277 = vmatpush1.bf16.msra.mxu0 0
    %278 = vmatprep.subr.bf16.mxu0 0
    %279 = vmatpush1.bf16.msra.mxu0 0
    %280 = vmatprep.subr.bf16.mxu0 0
    %281 = vmatpush1.bf16.msra.mxu0 0
    %282 = vmatprep.subr.bf16.mxu0 0
    %283 = vmatpush1.bf16.msra.mxu0 0
    %284 = vmatprep.subr.bf16.mxu0 0
    %285 = vmatpush1.bf16.msra.mxu0 0
    %286 = vmatprep.subr.bf16.mxu0 0
    %287 = vmatpush1.bf16.msra.mxu0 0
    %288 = vmatprep.subr.bf16.mxu0 0
    %289 = vmatpush1.bf16.msra.mxu0 0
    %290 = vmatprep.mubr.bf16.mxu0 0
    %291 = vmatmul.mubr.bf16.gmra.mrb[0].mxu0 %v256
    %v292 = vpop.f32.mrb[0].mxu0
    %v293 = vadd.f32 0.0, %v292
    %v294 = vpop.f32.mrb[0].mxu0
    %v295 = vpop.f32.mrb[0].mxu0
    %v296 = vpop.f32.mrb[0].mxu0
    %297 = vdwg.mxu0
    %v298 = vadd.f32 %v108, %v293
    %v299 = vxor.u32 %v298, 2147483648
    %v300 = vmul.f32 %v299, 1.442695
    %v301 = vpow.pop %v300
    %v302 = vadd.f32 %v301, 1.0
    %v303 = vrcp.pop %v302
    %v304 = vmul.f32 1.0, %v303
    %v305 = vadd.f32 %v293, %v224
    %307 = vrot.lane.b32.xlu0 %v305, 96
    %v308 = vpop.permute.xlu0 %307
    %v310 = vmul.f32 %v304, %v308
    %312 = vrot.lane.b32.xlu0 %v310, 32
    %v313 = vpop.permute.xlu0 %312
    %v315 = vadd.f32 %v108, %v313
    %v316 = vtanh.pop %v315
    %v317 = vsub.f32 1.0, %v304
    %319 = vrot.lane.b32.xlu0 %v250, 16
    %v320 = vpop.permute.xlu0 %319
    %v322 = vsub.f32 %v316, %v320
    %324 = vrot.lane.b32.xlu0 %v322, 112
    %v325 = vpop.permute.xlu0 %324
    %v327 = vmul.f32 %v317, %v325
    %329 = vset.pattern.permute.xlu0 0
    %330 = vperm.xlu0 %329, %v147
    %v331 = vpop.permute.xlu0 %330
    %v333 = vmul.f32 %v331, %v327
    %v334 = vadd.f32 %v250, %v333
    %v335 = vpack.c.bf16 %v334, %v334
    %337 = vrot.lane.b32.xlu0 %v335, 112
    %v338 = vpop.permute.xlu0 %337
    %v340 = vsel %vm54, %v338, 0
    %342 = vmatprep.subr.bf16.mxu0 0
    %343 = vmatpush1.bf16.msra.mxu0 %v170
    %344 = vmatprep.subr.bf16.mxu0 0
    %345 = vmatpush1.bf16.msra.mxu0 0
    %346 = vmatprep.subr.bf16.mxu0 0
    %347 = vmatpush1.bf16.msra.mxu0 0
    %348 = vmatprep.subr.bf16.mxu0 0
    %349 = vmatpush1.bf16.msra.mxu0 0
    %350 = vmatprep.subr.bf16.mxu0 0
    %351 = vmatpush1.bf16.msra.mxu0 0
    %352 = vmatprep.subr.bf16.mxu0 0
    %353 = vmatpush1.bf16.msra.mxu0 0
    %354 = vmatprep.subr.bf16.mxu0 0
    %355 = vmatpush1.bf16.msra.mxu0 0
    %356 = vmatprep.subr.bf16.mxu0 0
    %357 = vmatpush1.bf16.msra.mxu0 0
    %358 = vmatprep.subr.bf16.mxu0 0
    %359 = vmatpush1.bf16.msra.mxu0 0
    %360 = vmatprep.subr.bf16.mxu0 0
    %361 = vmatpush1.bf16.msra.mxu0 0
    %362 = vmatprep.subr.bf16.mxu0 0
    %363 = vmatpush1.bf16.msra.mxu0 0
    %364 = vmatprep.subr.bf16.mxu0 0
    %365 = vmatpush1.bf16.msra.mxu0 0
    %366 = vmatprep.subr.bf16.mxu0 0
    %367 = vmatpush1.bf16.msra.mxu0 0
    %368 = vmatprep.subr.bf16.mxu0 0
    %369 = vmatpush1.bf16.msra.mxu0 0
    %370 = vmatprep.subr.bf16.mxu0 0
    %371 = vmatpush1.bf16.msra.mxu0 0
    %372 = vmatprep.subr.bf16.mxu0 0
    %373 = vmatpush1.bf16.msra.mxu0 0
    %374 = vmatprep.mubr.bf16.mxu0 0
    %375 = vmatmul.mubr.bf16.gmra.mrb[0].mxu0 %v340
    %v376 = vpop.f32.mrb[0].mxu0
    %v377 = vadd.f32 0.0, %v376
    %v378 = vpop.f32.mrb[0].mxu0
    %v379 = vpop.f32.mrb[0].mxu0
    %v380 = vpop.f32.mrb[0].mxu0
    %381 = vdwg.mxu0
    %v382 = vadd.f32 %v113, %v377
    %v383 = vxor.u32 %v382, 2147483648
    %v384 = vmul.f32 %v383, 1.442695
    %v385 = vpow.pop %v384
    %v386 = vadd.f32 %v385, 1.0
    %v387 = vrcp.pop %v386
    %v388 = vmul.f32 1.0, %v387
    %v389 = vadd.f32 %v377, %v224
    %391 = vrot.lane.b32.xlu0 %v389, 96
    %v392 = vpop.permute.xlu0 %391
    %v394 = vmul.f32 %v388, %v392
    %396 = vrot.lane.b32.xlu0 %v394, 32
    %v397 = vpop.permute.xlu0 %396
    %v399 = vadd.f32 %v113, %v397
    %v400 = vtanh.pop %v399
    %v401 = vsub.f32 1.0, %v388
    %403 = vrot.lane.b32.xlu0 %v334, 16
    %v404 = vpop.permute.xlu0 %403
    %v406 = vsub.f32 %v400, %v404
    %408 = vrot.lane.b32.xlu0 %v406, 112
    %v409 = vpop.permute.xlu0 %408
    %v411 = vmul.f32 %v401, %v409
    %413 = vset.pattern.permute.xlu0 0
    %414 = vperm.xlu0 %413, %v150
    %v415 = vpop.permute.xlu0 %414
    %v417 = vmul.f32 %v415, %v411
    %v418 = vadd.f32 %v334, %v417
    %v419 = vpack.c.bf16 %v418, %v418
    %421 = vrot.lane.b32.xlu0 %v419, 112
    %v422 = vpop.permute.xlu0 %421
    %v424 = vsel %vm54, %v422, 0
    %426 = vmatprep.subr.bf16.mxu0 0
    %427 = vmatpush1.bf16.msra.mxu0 %v170
    %428 = vmatprep.subr.bf16.mxu0 0
    %429 = vmatpush1.bf16.msra.mxu0 0
    %430 = vmatprep.subr.bf16.mxu0 0
    %431 = vmatpush1.bf16.msra.mxu0 0
    %432 = vmatprep.subr.bf16.mxu0 0
    %433 = vmatpush1.bf16.msra.mxu0 0
    %434 = vmatprep.subr.bf16.mxu0 0
    %435 = vmatpush1.bf16.msra.mxu0 0
    %436 = vmatprep.subr.bf16.mxu0 0
    %437 = vmatpush1.bf16.msra.mxu0 0
    %438 = vmatprep.subr.bf16.mxu0 0
    %439 = vmatpush1.bf16.msra.mxu0 0
    %440 = vmatprep.subr.bf16.mxu0 0
    %441 = vmatpush1.bf16.msra.mxu0 0
    %442 = vmatprep.subr.bf16.mxu0 0
    %443 = vmatpush1.bf16.msra.mxu0 0
    %444 = vmatprep.subr.bf16.mxu0 0
    %445 = vmatpush1.bf16.msra.mxu0 0
    %446 = vmatprep.subr.bf16.mxu0 0
    %447 = vmatpush1.bf16.msra.mxu0 0
    %448 = vmatprep.subr.bf16.mxu0 0
    %449 = vmatpush1.bf16.msra.mxu0 0
    %450 = vmatprep.subr.bf16.mxu0 0
    %451 = vmatpush1.bf16.msra.mxu0 0
    %452 = vmatprep.subr.bf16.mxu0 0
    %453 = vmatpush1.bf16.msra.mxu0 0
    %454 = vmatprep.subr.bf16.mxu0 0
    %455 = vmatpush1.bf16.msra.mxu0 0
    %456 = vmatprep.subr.bf16.mxu0 0
    %457 = vmatpush1.bf16.msra.mxu0 0
    %458 = vmatprep.mubr.bf16.mxu0 0
    %459 = vmatmul.mubr.bf16.gmra.mrb[0].mxu0 %v424
    %v460 = vpop.f32.mrb[0].mxu0
    %v461 = vadd.f32 0.0, %v460
    %v462 = vpop.f32.mrb[0].mxu0
    %v463 = vpop.f32.mrb[0].mxu0
    %v464 = vpop.f32.mrb[0].mxu0
    %465 = vdwg.mxu0
    %v466 = vadd.f32 %v116, %v461
    %v467 = vxor.u32 %v466, 2147483648
    %v468 = vmul.f32 %v467, 1.442695
    %v469 = vpow.pop %v468
    %v470 = vadd.f32 %v469, 1.0
    %v471 = vrcp.pop %v470
    %v472 = vmul.f32 1.0, %v471
    %v473 = vadd.f32 %v461, %v224
    %475 = vrot.lane.b32.xlu0 %v473, 96
    %v476 = vpop.permute.xlu0 %475
    %v478 = vmul.f32 %v472, %v476
    %480 = vrot.lane.b32.xlu0 %v478, 32
    %v481 = vpop.permute.xlu0 %480
    %v483 = vadd.f32 %v116, %v481
    %v484 = vtanh.pop %v483
    %v485 = vsub.f32 1.0, %v472
    %487 = vrot.lane.b32.xlu0 %v418, 16
    %v488 = vpop.permute.xlu0 %487
    %v490 = vsub.f32 %v484, %v488
    %492 = vrot.lane.b32.xlu0 %v490, 112
    %v493 = vpop.permute.xlu0 %492
    %v495 = vmul.f32 %v485, %v493
    %497 = vset.pattern.permute.xlu0 0
    %498 = vperm.xlu0 %497, %v153
    %v499 = vpop.permute.xlu0 %498
    %v501 = vmul.f32 %v499, %v495
    %v502 = vadd.f32 %v418, %v501
    %v503 = vpack.c.bf16 %v502, %v502
    %505 = vrot.lane.b32.xlu0 %v503, 112
    %v506 = vpop.permute.xlu0 %505
    %v508 = vsel %vm54, %v506, 0
    %510 = vmatprep.subr.bf16.mxu0 0
    %511 = vmatpush1.bf16.msra.mxu0 %v170
    %512 = vmatprep.subr.bf16.mxu0 0
    %513 = vmatpush1.bf16.msra.mxu0 0
    %514 = vmatprep.subr.bf16.mxu0 0
    %515 = vmatpush1.bf16.msra.mxu0 0
    %516 = vmatprep.subr.bf16.mxu0 0
    %517 = vmatpush1.bf16.msra.mxu0 0
    %518 = vmatprep.subr.bf16.mxu0 0
    %519 = vmatpush1.bf16.msra.mxu0 0
    %520 = vmatprep.subr.bf16.mxu0 0
    %521 = vmatpush1.bf16.msra.mxu0 0
    %522 = vmatprep.subr.bf16.mxu0 0
    %523 = vmatpush1.bf16.msra.mxu0 0
    %524 = vmatprep.subr.bf16.mxu0 0
    %525 = vmatpush1.bf16.msra.mxu0 0
    %526 = vmatprep.subr.bf16.mxu0 0
    %527 = vmatpush1.bf16.msra.mxu0 0
    %528 = vmatprep.subr.bf16.mxu0 0
    %529 = vmatpush1.bf16.msra.mxu0 0
    %530 = vmatprep.subr.bf16.mxu0 0
    %531 = vmatpush1.bf16.msra.mxu0 0
    %532 = vmatprep.subr.bf16.mxu0 0
    %533 = vmatpush1.bf16.msra.mxu0 0
    %534 = vmatprep.subr.bf16.mxu0 0
    %535 = vmatpush1.bf16.msra.mxu0 0
    %536 = vmatprep.subr.bf16.mxu0 0
    %537 = vmatpush1.bf16.msra.mxu0 0
    %538 = vmatprep.subr.bf16.mxu0 0
    %539 = vmatpush1.bf16.msra.mxu0 0
    %540 = vmatprep.subr.bf16.mxu0 0
    %541 = vmatpush1.bf16.msra.mxu0 0
    %542 = vmatprep.mubr.bf16.mxu0 0
    %543 = vmatmul.mubr.bf16.gmra.mrb[0].mxu0 %v508
    %v544 = vpop.f32.mrb[0].mxu0
    %v545 = vadd.f32 0.0, %v544
    %v546 = vpop.f32.mrb[0].mxu0
    %v547 = vpop.f32.mrb[0].mxu0
    %v548 = vpop.f32.mrb[0].mxu0
    %549 = vdwg.mxu0
    %v550 = vadd.f32 %v121, %v545
    %v551 = vxor.u32 %v550, 2147483648
    %v552 = vmul.f32 %v551, 1.442695
    %v553 = vpow.pop %v552
    %v554 = vadd.f32 %v553, 1.0
    %v555 = vrcp.pop %v554
    %v556 = vmul.f32 1.0, %v555
    %v557 = vadd.f32 %v545, %v224
    %559 = vrot.lane.b32.xlu0 %v557, 96
    %v560 = vpop.permute.xlu0 %559
    %v562 = vmul.f32 %v556, %v560
    %564 = vrot.lane.b32.xlu0 %v562, 32
    %v565 = vpop.permute.xlu0 %564
    %v567 = vadd.f32 %v121, %v565
    %v568 = vtanh.pop %v567
    %v569 = vsub.f32 1.0, %v556
    %571 = vrot.lane.b32.xlu0 %v502, 16
    %v572 = vpop.permute.xlu0 %571
    %v574 = vsub.f32 %v568, %v572
    %576 = vrot.lane.b32.xlu0 %v574, 112
    %v577 = vpop.permute.xlu0 %576
    %v579 = vmul.f32 %v569, %v577
    %581 = vset.pattern.permute.xlu0 0
    %582 = vperm.xlu0 %581, %v156
    %v583 = vpop.permute.xlu0 %582
    %v585 = vmul.f32 %v583, %v579
    %v586 = vadd.f32 %v502, %v585
    %v587 = vpack.c.bf16 %v586, %v586
    %589 = vrot.lane.b32.xlu0 %v587, 112
    %v590 = vpop.permute.xlu0 %589
    %v592 = vsel %vm54, %v590, 0
    %594 = vmatprep.subr.bf16.mxu0 0
    %595 = vmatpush1.bf16.msra.mxu0 %v170
    %596 = vmatprep.subr.bf16.mxu0 0
    %597 = vmatpush1.bf16.msra.mxu0 0
    %598 = vmatprep.subr.bf16.mxu0 0
    %599 = vmatpush1.bf16.msra.mxu0 0
    %600 = vmatprep.subr.bf16.mxu0 0
    %601 = vmatpush1.bf16.msra.mxu0 0
    %602 = vmatprep.subr.bf16.mxu0 0
    %603 = vmatpush1.bf16.msra.mxu0 0
    %604 = vmatprep.subr.bf16.mxu0 0
    %605 = vmatpush1.bf16.msra.mxu0 0
    %606 = vmatprep.subr.bf16.mxu0 0
    %607 = vmatpush1.bf16.msra.mxu0 0
    %608 = vmatprep.subr.bf16.mxu0 0
    %609 = vmatpush1.bf16.msra.mxu0 0
    %610 = vmatprep.subr.bf16.mxu0 0
    %611 = vmatpush1.bf16.msra.mxu0 0
    %612 = vmatprep.subr.bf16.mxu0 0
    %613 = vmatpush1.bf16.msra.mxu0 0
    %614 = vmatprep.subr.bf16.mxu0 0
    %615 = vmatpush1.bf16.msra.mxu0 0
    %616 = vmatprep.subr.bf16.mxu0 0
    %617 = vmatpush1.bf16.msra.mxu0 0
    %618 = vmatprep.subr.bf16.mxu0 0
    %619 = vmatpush1.bf16.msra.mxu0 0
    %620 = vmatprep.subr.bf16.mxu0 0
    %621 = vmatpush1.bf16.msra.mxu0 0
    %622 = vmatprep.subr.bf16.mxu0 0
    %623 = vmatpush1.bf16.msra.mxu0 0
    %624 = vmatprep.subr.bf16.mxu0 0
    %625 = vmatpush1.bf16.msra.mxu0 0
    %626 = vmatprep.mubr.bf16.mxu0 0
    %627 = vmatmul.mubr.bf16.gmra.mrb[0].mxu0 %v592
    %v628 = vpop.f32.mrb[0].mxu0
    %v629 = vadd.f32 0.0, %v628
    %v630 = vpop.f32.mrb[0].mxu0
    %v631 = vpop.f32.mrb[0].mxu0
    %v632 = vpop.f32.mrb[0].mxu0
    %633 = vdwg.mxu0
    %v634 = vadd.f32 %v124, %v629
    %v635 = vxor.u32 %v634, 2147483648
    %v636 = vmul.f32 %v635, 1.442695
    %v637 = vpow.pop %v636
    %v638 = vadd.f32 %v637, 1.0
    %v639 = vrcp.pop %v638
    %v640 = vmul.f32 1.0, %v639
    %v641 = vadd.f32 %v629, %v224
    %643 = vrot.lane.b32.xlu0 %v641, 96
    %v644 = vpop.permute.xlu0 %643
    %v646 = vmul.f32 %v640, %v644
    %648 = vrot.lane.b32.xlu0 %v646, 32
    %v649 = vpop.permute.xlu0 %648
    %v651 = vadd.f32 %v124, %v649
    %v652 = vtanh.pop %v651
    %v653 = vsub.f32 1.0, %v640
    %655 = vrot.lane.b32.xlu0 %v586, 16
    %v656 = vpop.permute.xlu0 %655
    %v658 = vsub.f32 %v652, %v656
    %660 = vrot.lane.b32.xlu0 %v658, 112
    %v661 = vpop.permute.xlu0 %660
    %v663 = vmul.f32 %v653, %v661
    %665 = vset.pattern.permute.xlu0 0
    %666 = vperm.xlu0 %665, %v159
    %v667 = vpop.permute.xlu0 %666
    %v669 = vmul.f32 %v667, %v663
    %v670 = vadd.f32 %v586, %v669
    %v671 = vpack.c.bf16 %v670, %v670
    %673 = vrot.lane.b32.xlu0 %v671, 112
    %v674 = vpop.permute.xlu0 %673
    %v676 = vsel %vm54, %v674, 0
    %678 = vmatprep.subr.bf16.mxu0 0
    %679 = vmatpush1.bf16.msra.mxu0 %v170
    %680 = vmatprep.subr.bf16.mxu0 0
    %681 = vmatpush1.bf16.msra.mxu0 0
    %682 = vmatprep.subr.bf16.mxu0 0
    %683 = vmatpush1.bf16.msra.mxu0 0
    %684 = vmatprep.subr.bf16.mxu0 0
    %685 = vmatpush1.bf16.msra.mxu0 0
    %686 = vmatprep.subr.bf16.mxu0 0
    %687 = vmatpush1.bf16.msra.mxu0 0
    %688 = vmatprep.subr.bf16.mxu0 0
    %689 = vmatpush1.bf16.msra.mxu0 0
    %690 = vmatprep.subr.bf16.mxu0 0
    %691 = vmatpush1.bf16.msra.mxu0 0
    %692 = vmatprep.subr.bf16.mxu0 0
    %693 = vmatpush1.bf16.msra.mxu0 0
    %694 = vmatprep.subr.bf16.mxu0 0
    %695 = vmatpush1.bf16.msra.mxu0 0
    %696 = vmatprep.subr.bf16.mxu0 0
    %697 = vmatpush1.bf16.msra.mxu0 0
    %698 = vmatprep.subr.bf16.mxu0 0
    %699 = vmatpush1.bf16.msra.mxu0 0
    %700 = vmatprep.subr.bf16.mxu0 0
    %701 = vmatpush1.bf16.msra.mxu0 0
    %702 = vmatprep.subr.bf16.mxu0 0
    %703 = vmatpush1.bf16.msra.mxu0 0
    %704 = vmatprep.subr.bf16.mxu0 0
    %705 = vmatpush1.bf16.msra.mxu0 0
    %706 = vmatprep.subr.bf16.mxu0 0
    %707 = vmatpush1.bf16.msra.mxu0 0
    %708 = vmatprep.subr.bf16.mxu0 0
    %709 = vmatpush1.bf16.msra.mxu0 0
    %710 = vmatprep.mubr.bf16.mxu0 0
    %711 = vmatmul.mubr.bf16.gmra.mrb[0].mxu0 %v676
    %v712 = vpop.f32.mrb[0].mxu0
    %v713 = vadd.f32 0.0, %v712
    %v714 = vpop.f32.mrb[0].mxu0
    %v715 = vpop.f32.mrb[0].mxu0
    %v716 = vpop.f32.mrb[0].mxu0
    %717 = vdwg.mxu0
    %v718 = vadd.f32 %v129, %v713
    %v719 = vxor.u32 %v718, 2147483648
    %v720 = vmul.f32 %v719, 1.442695
    %v721 = vpow.pop %v720
    %v722 = vadd.f32 %v721, 1.0
    %v723 = vrcp.pop %v722
    %v724 = vmul.f32 1.0, %v723
    %v725 = vadd.f32 %v713, %v224
    %727 = vrot.lane.b32.xlu0 %v725, 96
    %v728 = vpop.permute.xlu0 %727
    %v730 = vmul.f32 %v724, %v728
    %732 = vrot.lane.b32.xlu0 %v730, 32
    %v733 = vpop.permute.xlu0 %732
    %v735 = vadd.f32 %v129, %v733
    %v736 = vtanh.pop %v735
    %v737 = vsub.f32 1.0, %v724
    %739 = vrot.lane.b32.xlu0 %v670, 16
    %v740 = vpop.permute.xlu0 %739
    %v742 = vsub.f32 %v736, %v740
    %744 = vrot.lane.b32.xlu0 %v742, 112
    %v745 = vpop.permute.xlu0 %744
    %v747 = vmul.f32 %v737, %v745
    %749 = vset.pattern.permute.xlu0 0
    %750 = vperm.xlu0 %749, %v162
    %v751 = vpop.permute.xlu0 %750
    %v753 = vmul.f32 %v751, %v747
    %v754 = vadd.f32 %v670, %v753
    %v755 = vpack.c.bf16 %v754, %v754
    %757 = vrot.lane.b32.xlu0 %v755, 112
    %v758 = vpop.permute.xlu0 %757
    %v760 = vsel %vm54, %v758, 0
    %762 = vmatprep.subr.bf16.mxu0 0
    %763 = vmatpush1.bf16.msra.mxu0 %v170
    %764 = vmatprep.subr.bf16.mxu0 0
    %765 = vmatpush1.bf16.msra.mxu0 0
    %766 = vmatprep.subr.bf16.mxu0 0
    %767 = vmatpush1.bf16.msra.mxu0 0
    %768 = vmatprep.subr.bf16.mxu0 0
    %769 = vmatpush1.bf16.msra.mxu0 0
    %770 = vmatprep.subr.bf16.mxu0 0
    %771 = vmatpush1.bf16.msra.mxu0 0
    %772 = vmatprep.subr.bf16.mxu0 0
    %773 = vmatpush1.bf16.msra.mxu0 0
    %774 = vmatprep.subr.bf16.mxu0 0
    %775 = vmatpush1.bf16.msra.mxu0 0
    %776 = vmatprep.subr.bf16.mxu0 0
    %777 = vmatpush1.bf16.msra.mxu0 0
    %778 = vmatprep.subr.bf16.mxu0 0
    %779 = vmatpush1.bf16.msra.mxu0 0
    %780 = vmatprep.subr.bf16.mxu0 0
    %781 = vmatpush1.bf16.msra.mxu0 0
    %782 = vmatprep.subr.bf16.mxu0 0
    %783 = vmatpush1.bf16.msra.mxu0 0
    %784 = vmatprep.subr.bf16.mxu0 0
    %785 = vmatpush1.bf16.msra.mxu0 0
    %786 = vmatprep.subr.bf16.mxu0 0
    %787 = vmatpush1.bf16.msra.mxu0 0
    %788 = vmatprep.subr.bf16.mxu0 0
    %789 = vmatpush1.bf16.msra.mxu0 0
    %790 = vmatprep.subr.bf16.mxu0 0
    %791 = vmatpush1.bf16.msra.mxu0 0
    %792 = vmatprep.subr.bf16.mxu0 0
    %793 = vmatpush1.bf16.msra.mxu0 0
    %794 = vmatprep.mubr.bf16.mxu0 0
    %795 = vmatmul.mubr.bf16.gmra.mrb[0].mxu0 %v760
    %v796 = vpop.f32.mrb[0].mxu0
    %v797 = vadd.f32 0.0, %v796
    %v798 = vpop.f32.mrb[0].mxu0
    %v799 = vpop.f32.mrb[0].mxu0
    %v800 = vpop.f32.mrb[0].mxu0
    %801 = vdwg.mxu0
    %v802 = vadd.f32 %v132, %v797
    %v803 = vxor.u32 %v802, 2147483648
    %v804 = vmul.f32 %v803, 1.442695
    %v805 = vpow.pop %v804
    %v806 = vadd.f32 %v805, 1.0
    %v807 = vrcp.pop %v806
    %v808 = vmul.f32 1.0, %v807
    %v809 = vadd.f32 %v797, %v224
    %811 = vrot.lane.b32.xlu0 %v809, 96
    %v812 = vpop.permute.xlu0 %811
    %v814 = vmul.f32 %v808, %v812
    %816 = vrot.lane.b32.xlu0 %v814, 32
    %v817 = vpop.permute.xlu0 %816
    %v819 = vadd.f32 %v132, %v817
    %v820 = vtanh.pop %v819
    %v821 = vsub.f32 1.0, %v808
    %823 = vrot.lane.b32.xlu0 %v754, 16
    %v824 = vpop.permute.xlu0 %823
    %v826 = vsub.f32 %v820, %v824
    %828 = vrot.lane.b32.xlu0 %v826, 112
    %v829 = vpop.permute.xlu0 %828
    %v831 = vmul.f32 %v821, %v829
    %833 = vset.pattern.permute.xlu0 0
    %834 = vperm.xlu0 %833, %v165
    %v835 = vpop.permute.xlu0 %834
    %v837 = vmul.f32 %v835, %v831
    %v838 = vadd.f32 %v754, %v837
    %v839 = vxor.u32 %v137, 2147483648
    %v840 = vmul.f32 %v839, 1.442695
    %v841 = vpow.pop %v840
    %v842 = vadd.f32 %v841, 1.0
    %v843 = vrcp.pop %v842
    %v844 = vmul.f32 1.0, %v843
    %v845 = vmul.f32 %v844, %v224
    %847 = vrot.lane.b32.xlu0 %v845, 32
    %v848 = vpop.permute.xlu0 %847
    %v850 = vadd.f32 %v137, %v848
    %v851 = vtanh.pop %v850
    %v852 = vsub.f32 1.0, %v844
    %854 = vrot.lane.b32.xlu0 %v851, 112
    %v855 = vpop.permute.xlu0 %854
    %v857 = vmul.f32 %v852, %v855
    %859 = vrot.lane.b32.xlu0 %v838, 112
    %v860 = vpop.permute.xlu0 %859
    %863 = vrot.lane.b32.xlu0 %v857, 80
    %v864 = vpop.permute.xlu0 %863
    %v866 = vsel %vm54, %v860, %v864
    %v867 = vpack.c.bf16 %v866, %v866
    %v868 = vlaneseq
    %v869 = vshrl.u32 %v868, 7
    %v870 = vsub.s32 0, %v869
    %v871 = vrot.slane %v27, %v870
    %v876 = vunpack.c.l.b16 %v23
    %v877 = vunpack.c.l.b16 %v24
    %v878 = vunpack.c.l.b16 %v25
    %v879 = vunpack.c.l.b16 %v26
    %v880 = vpack.c.b16 %v877, %v876
    %v881 = vpack.c.b16 %v879, %v878
    %vm884 = vcmask 261120
    %v886 = vsel %vm884, %v867, 0
    %888 = vmatprep.subr.bf16.mxu0 0
    %889 = vmatpush1.bf16.msra.mxu0 %v880
    %890 = vmatprep.subr.bf16.mxu0 0
    %891 = vmatpush1.bf16.msra.mxu0 %v881
    %892 = vmatprep.subr.bf16.mxu0 0
    %893 = vmatpush1.bf16.msra.mxu0 0
    %894 = vmatprep.subr.bf16.mxu0 0
    %895 = vmatpush1.bf16.msra.mxu0 0
    %896 = vmatprep.subr.bf16.mxu0 0
    %897 = vmatpush1.bf16.msra.mxu0 0
    %898 = vmatprep.subr.bf16.mxu0 0
    %899 = vmatpush1.bf16.msra.mxu0 0
    %900 = vmatprep.subr.bf16.mxu0 0
    %901 = vmatpush1.bf16.msra.mxu0 0
    %902 = vmatprep.subr.bf16.mxu0 0
    %903 = vmatpush1.bf16.msra.mxu0 0
    %904 = vmatprep.subr.bf16.mxu0 0
    %905 = vmatpush1.bf16.msra.mxu0 0
    %906 = vmatprep.subr.bf16.mxu0 0
    %907 = vmatpush1.bf16.msra.mxu0 0
    %908 = vmatprep.subr.bf16.mxu0 0
    %909 = vmatpush1.bf16.msra.mxu0 0
    %910 = vmatprep.subr.bf16.mxu0 0
    %911 = vmatpush1.bf16.msra.mxu0 0
    %912 = vmatprep.subr.bf16.mxu0 0
    %913 = vmatpush1.bf16.msra.mxu0 0
    %914 = vmatprep.subr.bf16.mxu0 0
    %915 = vmatpush1.bf16.msra.mxu0 0
    %916 = vmatprep.subr.bf16.mxu0 0
    %917 = vmatpush1.bf16.msra.mxu0 0
    %918 = vmatprep.subr.bf16.mxu0 0
    %919 = vmatpush1.bf16.msra.mxu0 0
    %920 = vmatprep.mubr.bf16.mxu0 0
    %921 = vmatmul.mubr.bf16.gmra.mrb[0].mxu0 %v886
    %v922 = vpop.f32.mrb[0].mxu0
    %v923 = vadd.f32 %v871, %v922
    %v924 = vpop.f32.mrb[0].mxu0
    %v925 = vpop.f32.mrb[0].mxu0
    %v926 = vpop.f32.mrb[0].mxu0
    %927 = vdwg.mxu0
    %928 = vst [vmem:[#allocation2] sm:$0xff] %v923
    // Predicated region
    $region18: #{tpu_custom_call.1} parent=1 // pred_check
      _
    $region19: #{tpu_custom_call.1} parent=1 // pred_check_branch
      %930 = sbr.rel (0) target = $region21
    $region20: #{tpu_custom_call.1} parent=1 // pred_region
      %s932 = ssub.s32 128, 128
      %933 = vsyncadd [#allocation3], %s932
      %s935 = sshll.u32 [#allocation2], 4
      %s936 = int_to_ptr.vmem [resolvable:$true] %s935
      %938 = dma.vmem_to_hbm [thread:$0]  %s936, 128, %s4, [#allocation3]
    $region21: #{tpu_custom_call.1} parent=1 // pred_fallthru
      _
    // Predicated region
    $region22: #{tpu_custom_call.1} parent=1 // pred_check
      _
    $region23: #{tpu_custom_call.1} parent=1 // pred_check_branch
      %940 = sbr.rel (0) target = $region25
    $region24: #{tpu_custom_call.1} parent=1 // pred_region
      %941 = dma.done [#allocation3], 128
    $region25: #{tpu_custom_call.1} parent=1 // pred_fallthru
      _
    %942 = vsyncpa [#allocation3], 1

</llo_original>
